<compile_context>
chip_gen: v7x
topology: tpu7x:2x2x1
jax: 0.10.0
libtpu: 0.0.40
codegen_flags: <defaults>
</compile_context>

<pallas_src>
import jax
import jax.numpy as jnp
from jax.experimental import pallas as pl
from jax.experimental.pallas import tpu as pltpu


# --------------------------------------------------------------------------
# Phase 1: per-sample statistics, lane-dense (1, T) outputs.
# --------------------------------------------------------------------------
def _stats_kernel(logits_ref, tgt_ref, mask_ref, v_ref, e_ref, r_ref, ce_ref):
    logits = logits_ref[...]          # (C, T) f32 -- classes along sublanes
    tgt = tgt_ref[...]                # (1, T) i32
    mask = mask_ref[...]              # (1, T) f32, 0.0 for padded samples
    C = logits.shape[0]

    # numerically stable softmax statistics (sublane reductions over C rows)
    m = jnp.max(logits, axis=0, keepdims=True)                       # (1,T)
    sumexp = jnp.sum(jnp.exp(logits - m), axis=0, keepdims=True)     # (1,T)
    lse = jnp.log(sumexp) + m                                        # (1,T)
    p = pl.reciprocal(sumexp, approx=False)   # max softmax prob = 1/sumexp

    # predicted label (first-max index) & correctness mask
    row_ids = jax.lax.broadcasted_iota(jnp.int32, logits.shape, 0)   # (C,T)
    pred = jnp.min(jnp.where(logits == m, row_ids, C), axis=0, keepdims=True)
    correct = (pred == tgt).astype(jnp.float32)                      # (1,T)

    # per-sample cross entropy term: lse - logit[target]
    onehot = (row_ids == tgt).astype(jnp.float32)                    # (C,T)
    logit_at_tgt = jnp.sum(logits * onehot, axis=0, keepdims=True)   # (1,T)

    e = jnp.exp(p * 2.5)                         # exp(+p/0.4)
    v_ref[...] = (correct - p) * mask            # (c_i - p_i), 0 on padding
    e_ref[...] = e
    r_ref[...] = pl.reciprocal(e, approx=False)  # exp(-p/0.4) = 1/e
    ce_ref[...] = (lse - logit_at_tgt) * mask    # per-sample CE, 0 on padding


# --------------------------------------------------------------------------
# Phase 2: pairwise reduction, j axis fused into an in-kernel loop.
# --------------------------------------------------------------------------
def _make_pairwise_kernel(tile_j):
    def kernel(v_col_ref, e_col_ref, r_col_ref,
               v_row_ref, e_row_ref, r_row_ref, out_ref):
        v_i = v_col_ref[...]                 # (TILE_I, 1)
        e_i = e_col_ref[...]                 # (TILE_I, 1)
        r_i = r_col_ref[...]                 # (TILE_I, 1)

        n_total = v_row_ref.shape[-1]        # static
        num_tj = n_total // tile_j           # static trip count

        def body(jt, acc):
            j0 = pl.multiple_of(jt * tile_j, tile_j)
            vj = v_row_ref[:, pl.ds(j0, tile_j)]     # (1, Tj)
            ej = e_row_ref[:, pl.ds(j0, tile_j)]     # (1, Tj)
            rj = r_row_ref[:, pl.ds(j0, tile_j)]     # (1, Tj)

            # exp(-|p_i - p_j|/0.4) == min(e_i*r_j, r_i*e_j): no N^2 exps.
            k = jnp.minimum(e_i * rj, r_i * ej)      # (TILE_I, Tj)
            w = v_i * k                              # (TILE_I, Tj)
            # factor v_j out: sublane-reduce over i, keep lanes dense
            col = jnp.sum(w, axis=0, keepdims=True)  # (1, Tj)
            return acc + vj * col                    # pure VPU accumulate

        acc = jax.lax.fori_loop(0, num_tj, body,
                                jnp.zeros((1, tile_j), jnp.float32))
        # single cross-lane reduce per i-block, written as a full 128-lane tile
        total = jnp.sum(acc)
        out_ref[...] = jnp.broadcast_to(total, out_ref.shape)

    return kernel


# --------------------------------------------------------------------------
# Wrapper: reshape glue (matches the PyTorch module), padding, two calls.
# --------------------------------------------------------------------------
def _round_up(x, m):
    return (x + m - 1) // m * m


def _pick_tile(total, candidates):
    for c in candidates:
        if total % c == 0:
            return c
    return candidates[-1]


def mmce_loss(inputs, target, lamda=1.0):
    """Pallas implementation of MMCE.forward. Returns a scalar float32."""
    x = inputs.astype(jnp.float32)
    t = target.reshape(-1).astype(jnp.int32)

    if x.ndim > 2:
        B, C = x.shape[0], x.shape[1]
        hw = 1
        for d in x.shape[2:]:
            hw *= d
        x3 = x.reshape(B, C, hw)          # NCHW is already lane-dense: no transpose
    else:
        N0, C = x.shape
        B, hw = 1, N0
        # 2-D classification logits: one small transposed copy (samples -> lanes)
        x3 = jnp.transpose(x, (1, 0)).reshape(1, C, hw)

    N = B * hw                             # true sample count
    hw_pad = _round_up(hw, 256)
    pad = hw_pad - hw
    if pad:
        x3 = jnp.pad(x3, ((0, 0), (0, 0), (0, pad)))
    tgt = jnp.pad(t.reshape(B, 1, hw), ((0, 0), (0, 0), (0, pad)))
    mask = (jnp.arange(hw_pad) < hw).astype(jnp.float32)
    mask = jnp.broadcast_to(mask.reshape(1, 1, hw_pad), (B, 1, hw_pad))

    n_total = B * hw_pad

    # ---------------- phase 1 -------------------------------------------
    t1 = _pick_tile(hw_pad, [2048, 1024, 512, 256])
    while C * t1 * 4 > (4 << 20) and t1 > 256:     # cap block bytes for huge C
        t1 //= 2

    spec_logits = pl.BlockSpec((None, C, t1), lambda b, i: (b, 0, i))
    spec_row = pl.BlockSpec((None, 1, t1), lambda b, i: (b, 0, i))
    row3 = jax.ShapeDtypeStruct((B, 1, hw_pad), jnp.float32)

    v3, e3, r3, ce3 = pl.pallas_call(
        _stats_kernel,
        out_shape=(row3, row3, row3, row3),
        grid=(B, hw_pad // t1),
        in_specs=[spec_logits, spec_row, spec_row],
        out_specs=(spec_row, spec_row, spec_row, spec_row),
        compiler_params=pltpu.CompilerParams(
            dimension_semantics=("parallel", "parallel")),
    )(x3, tgt, mask)

    # free, row-major-preserving reshapes (no data movement)
    v_row = v3.reshape(1, n_total)
    e_row = e3.reshape(1, n_total)
    r_row = r3.reshape(1, n_total)
    v_col = v3.reshape(n_total, 1)
    e_col = e3.reshape(n_total, 1)
    r_col = r3.reshape(n_total, 1)

    # ---------------- phase 2 -------------------------------------------
    TILE_I = 256
    num_ti = n_total // TILE_I
    tile_j = _pick_tile(n_total, [2048, 1024, 512, 256])

    col_spec = pl.BlockSpec((TILE_I, 1), lambda i: (i, 0))
    rowfull_spec = pl.BlockSpec((1, n_total), lambda i: (0, 0))   # resident rows
    out_spec = pl.BlockSpec((1, 1, 128), lambda i: (i, 0, 0))

    # resident rows: 3 arrays x 4 B x n_total (x2 buffers) + slack, capped for v7x
    vmem_bytes = int(min(64 << 20, max(32 << 20, 24 * n_total + (4 << 20))))

    parts = pl.pallas_call(
        _make_pairwise_kernel(tile_j),
        out_shape=jax.ShapeDtypeStruct((num_ti, 1, 128), jnp.float32),
        grid=(num_ti,),
        in_specs=[col_spec, col_spec, col_spec,
                  rowfull_spec, rowfull_spec, rowfull_spec],
        out_specs=out_spec,
        compiler_params=pltpu.CompilerParams(
            dimension_semantics=("parallel",),
            vmem_limit_bytes=vmem_bytes),
        cost_estimate=pl.CostEstimate(
            flops=5 * n_total * n_total,
            transcendentals=0,
            bytes_accessed=6 * 4 * n_total + num_ti * 128 * 4),
    )(v_col, e_col, r_col, v_row, e_row, r_row)

    # tiny final reductions (N and num_ti elements) stay in XLA
    ce = jnp.sum(ce3) / N
    mmce = jnp.sum(parts[:, 0, 0]) / (N * N)
    return ce + lamda * mmce


# --------------------------------------------------------------------------
# Pure-JAX reference mirroring the PyTorch module.
# --------------------------------------------------------------------------
def mmce_ref(inputs, target, lamda=1.0):
    x = inputs
    if x.ndim > 2:
        B, C = x.shape[0], x.shape[1]
        x = jnp.transpose(x.reshape(B, C, -1), (0, 2, 1)).reshape(-1, C)
    x = x.astype(jnp.float32)
    t = target.reshape(-1).astype(jnp.int32)
    probs = jax.nn.softmax(x, axis=1)
    p = jnp.max(probs, axis=1)
    pred = jnp.argmax(x, axis=1)
    correct = (pred == t).astype(jnp.float32)
    v = correct - p
    dot = v[:, None] * v[None, :]
    kern = jnp.exp(-jnp.abs(p[:, None] - p[None, :]) / 0.4)
    lse = jax.scipy.special.logsumexp(x, axis=1)
    ce = jnp.mean(lse - x[jnp.arange(x.shape[0]), t])
    return ce + lamda * jnp.sum(dot * kern) / (x.shape[0] ** 2)


if __name__ == "__main__":
    key = jax.random.PRNGKey(0)
    k1, k2 = jax.random.split(key)

    # Conv-style logits: NCHW, 4 classes, per-pixel labels (like the torch module).
    B, C, H, W = 2, 4, 16, 16
    logits = jax.random.normal(k1, (B, C, H, W), dtype=jnp.float32)
    labels = jax.random.randint(k2, (B, H, W), 0, C, dtype=jnp.int32)

    loss = mmce_loss(logits, labels, lamda=1.0)
    loss = jax.block_until_ready(loss)

    ref = jax.block_until_ready(mmce_ref(logits, labels, lamda=1.0))
    assert jnp.allclose(loss, ref, rtol=1e-4, atol=1e-5), (loss, ref)

    print("KERNEL_OK")
</pallas_src>

<mosaic_0001>
module attributes {stable_mosaic.version = 11 : i64} {
  func.func @_stats_kernel(%arg0: i32, %arg1: i32, %arg2: memref<1x4x256xf32, #tpu.memory_space<vmem>>, %arg3: memref<1x1x256xi32, #tpu.memory_space<vmem>>, %arg4: memref<1x1x256xf32, #tpu.memory_space<vmem>>, %arg5: memref<1x1x256xf32, #tpu.memory_space<vmem>>, %arg6: memref<1x1x256xf32, #tpu.memory_space<vmem>>, %arg7: memref<1x1x256xf32, #tpu.memory_space<vmem>>, %arg8: memref<1x1x256xf32, #tpu.memory_space<vmem>>) attributes {dimension_semantics = [#tpu.dimension_semantics<parallel>, #tpu.dimension_semantics<parallel>], iteration_bounds = array<i64: 2, 1>, scalar_prefetch = 0 : i64, scratch_operands = 0 : i64, tpu.core_type = #tpu.core_type<tc>, window_params = [{transform_indices = @transform_0, window_bounds = array<i64: 1, 4, 256>}, {transform_indices = @transform_1, window_bounds = array<i64: 1, 1, 256>}, {transform_indices = @transform_2, window_bounds = array<i64: 1, 1, 256>}, {transform_indices = @transform_3, window_bounds = array<i64: 1, 1, 256>}, {transform_indices = @transform_4, window_bounds = array<i64: 1, 1, 256>}, {transform_indices = @transform_5, window_bounds = array<i64: 1, 1, 256>}, {transform_indices = @transform_6, window_bounds = array<i64: 1, 1, 256>}]} {
    %c0 = arith.constant 0 : index
    %c0_0 = arith.constant 0 : index
    %c0_1 = arith.constant 0 : index
    %0 = vector.load %arg2[%c0, %c0_0, %c0_1] : memref<1x4x256xf32, #tpu.memory_space<vmem>>, vector<1x4x256xf32>
    %1 = vector.shape_cast %0 : vector<1x4x256xf32> to vector<4x256xf32>
    %c0_2 = arith.constant 0 : index
    %c0_3 = arith.constant 0 : index
    %c0_4 = arith.constant 0 : index
    %2 = vector.load %arg3[%c0_2, %c0_3, %c0_4] : memref<1x1x256xi32, #tpu.memory_space<vmem>>, vector<1x1x256xi32>
    %3 = vector.shape_cast %2 : vector<1x1x256xi32> to vector<1x256xi32>
    %c0_5 = arith.constant 0 : index
    %c0_6 = arith.constant 0 : index
    %c0_7 = arith.constant 0 : index
    %4 = vector.load %arg4[%c0_5, %c0_6, %c0_7] : memref<1x1x256xf32, #tpu.memory_space<vmem>>, vector<1x1x256xf32>
    %5 = vector.shape_cast %4 : vector<1x1x256xf32> to vector<1x256xf32>
    %cst = arith.constant dense<0xFF800000> : vector<256xf32>
    %6 = vector.multi_reduction <maximumf>, %1, %cst [0] : vector<4x256xf32> to vector<256xf32>
    %7 = vector.shape_cast %6 : vector<256xf32> to vector<1x256xf32>
    %8 = vector.broadcast %7 : vector<1x256xf32> to vector<4x256xf32>
    %9 = arith.subf %1, %8 : vector<4x256xf32>
    %10 = math.exp %9 : vector<4x256xf32>
    %cst_8 = arith.constant dense<0.000000e+00> : vector<256xf32>
    %11 = vector.multi_reduction <add>, %10, %cst_8 [0] : vector<4x256xf32> to vector<256xf32>
    %12 = vector.shape_cast %11 : vector<256xf32> to vector<1x256xf32>
    %13 = math.log %12 : vector<1x256xf32>
    %14 = arith.addf %13, %7 : vector<1x256xf32>
    %15 = tpu.reciprocal %12 : vector<1x256xf32> -> vector<1x256xf32>
    %16 = tpu.iota {dimensions = array<i32: 0>} : vector<4x256xi32>
    %17 = vector.broadcast %7 : vector<1x256xf32> to vector<4x256xf32>
    %18 = arith.cmpf oeq, %1, %17 : vector<4x256xf32>
    %c4_i32 = arith.constant 4 : i32
    %19 = vector.broadcast %c4_i32 : i32 to vector<4x256xi32>
    %20 = arith.select %18, %16, %19 : vector<4x256xi1>, vector<4x256xi32>
    %cst_9 = arith.constant dense<2147483647> : vector<256xi32>
    %21 = vector.multi_reduction <minsi>, %20, %cst_9 [0] : vector<4x256xi32> to vector<256xi32>
    %22 = vector.shape_cast %21 : vector<256xi32> to vector<1x256xi32>
    %23 = arith.cmpi eq, %22, %3 : vector<1x256xi32>
    %24 = arith.extui %23 : vector<1x256xi1> to vector<1x256xi32>
    %25 = arith.sitofp %24 : vector<1x256xi32> to vector<1x256xf32>
    %26 = vector.broadcast %3 : vector<1x256xi32> to vector<4x256xi32>
    %27 = arith.cmpi eq, %16, %26 : vector<4x256xi32>
    %28 = arith.extui %27 : vector<4x256xi1> to vector<4x256xi32>
    %29 = arith.sitofp %28 : vector<4x256xi32> to vector<4x256xf32>
    %30 = arith.mulf %1, %29 : vector<4x256xf32>
    %cst_10 = arith.constant dense<0.000000e+00> : vector<256xf32>
    %31 = vector.multi_reduction <add>, %30, %cst_10 [0] : vector<4x256xf32> to vector<256xf32>
    %32 = vector.shape_cast %31 : vector<256xf32> to vector<1x256xf32>
    %cst_11 = arith.constant 2.500000e+00 : f32
    %33 = vector.broadcast %cst_11 : f32 to vector<1x256xf32>
    %34 = arith.mulf %15, %33 : vector<1x256xf32>
    %35 = math.exp %34 : vector<1x256xf32>
    %36 = arith.subf %25, %15 : vector<1x256xf32>
    %37 = arith.mulf %36, %5 : vector<1x256xf32>
    %c0_12 = arith.constant 0 : index
    %c0_13 = arith.constant 0 : index
    %c0_14 = arith.constant 0 : index
    %38 = vector.load %arg5[%c0_12, %c0_13, %c0_14] : memref<1x1x256xf32, #tpu.memory_space<vmem>>, vector<1x1x256xf32>
    %39 = vector.shape_cast %38 : vector<1x1x256xf32> to vector<1x256xf32>
    %40 = vector.shape_cast %37 : vector<1x256xf32> to vector<1x1x256xf32>
    tpu.vector_store %arg5[%c0_12, %c0_13, %c0_14], %40 {strides = array<i32>} : memref<1x1x256xf32, #tpu.memory_space<vmem>>, vector<1x1x256xf32>,
    %c0_15 = arith.constant 0 : index
    %c0_16 = arith.constant 0 : index
    %c0_17 = arith.constant 0 : index
    %41 = vector.load %arg6[%c0_15, %c0_16, %c0_17] : memref<1x1x256xf32, #tpu.memory_space<vmem>>, vector<1x1x256xf32>
    %42 = vector.shape_cast %41 : vector<1x1x256xf32> to vector<1x256xf32>
    %43 = vector.shape_cast %35 : vector<1x256xf32> to vector<1x1x256xf32>
    tpu.vector_store %arg6[%c0_15, %c0_16, %c0_17], %43 {strides = array<i32>} : memref<1x1x256xf32, #tpu.memory_space<vmem>>, vector<1x1x256xf32>,
    %44 = tpu.reciprocal %35 : vector<1x256xf32> -> vector<1x256xf32>
    %c0_18 = arith.constant 0 : index
    %c0_19 = arith.constant 0 : index
    %c0_20 = arith.constant 0 : index
    %45 = vector.load %arg7[%c0_18, %c0_19, %c0_20] : memref<1x1x256xf32, #tpu.memory_space<vmem>>, vector<1x1x256xf32>
    %46 = vector.shape_cast %45 : vector<1x1x256xf32> to vector<1x256xf32>
    %47 = vector.shape_cast %44 : vector<1x256xf32> to vector<1x1x256xf32>
    tpu.vector_store %arg7[%c0_18, %c0_19, %c0_20], %47 {strides = array<i32>} : memref<1x1x256xf32, #tpu.memory_space<vmem>>, vector<1x1x256xf32>,
    %48 = arith.subf %14, %32 : vector<1x256xf32>
    %49 = arith.mulf %48, %5 : vector<1x256xf32>
    %c0_21 = arith.constant 0 : index
    %c0_22 = arith.constant 0 : index
    %c0_23 = arith.constant 0 : index
    %50 = vector.load %arg8[%c0_21, %c0_22, %c0_23] : memref<1x1x256xf32, #tpu.memory_space<vmem>>, vector<1x1x256xf32>
    %51 = vector.shape_cast %50 : vector<1x1x256xf32> to vector<1x256xf32>
    %52 = vector.shape_cast %49 : vector<1x256xf32> to vector<1x1x256xf32>
    tpu.vector_store %arg8[%c0_21, %c0_22, %c0_23], %52 {strides = array<i32>} : memref<1x1x256xf32, #tpu.memory_space<vmem>>, vector<1x1x256xf32>,
    return
  }
  func.func @transform_0(%arg0: i32, %arg1: i32) -> (i32, i32, i32) {
    %c0_i32 = arith.constant 0 : i32
    %c0_i32_0 = arith.constant 0 : i32
    return %arg0, %c0_i32, %arg1 : i32, i32, i32
  }
  func.func @transform_1(%arg0: i32, %arg1: i32) -> (i32, i32, i32) {
    %c0_i32 = arith.constant 0 : i32
    %c0_i32_0 = arith.constant 0 : i32
    return %arg0, %c0_i32, %arg1 : i32, i32, i32
  }
  func.func @transform_2(%arg0: i32, %arg1: i32) -> (i32, i32, i32) {
    %c0_i32 = arith.constant 0 : i32
    %c0_i32_0 = arith.constant 0 : i32
    return %arg0, %c0_i32, %arg1 : i32, i32, i32
  }
  func.func @transform_3(%arg0: i32, %arg1: i32) -> (i32, i32, i32) {
    %c0_i32 = arith.constant 0 : i32
    %c0_i32_0 = arith.constant 0 : i32
    return %arg0, %c0_i32, %arg1 : i32, i32, i32
  }
  func.func @transform_4(%arg0: i32, %arg1: i32) -> (i32, i32, i32) {
    %c0_i32 = arith.constant 0 : i32
    %c0_i32_0 = arith.constant 0 : i32
    return %arg0, %c0_i32, %arg1 : i32, i32, i32
  }
  func.func @transform_5(%arg0: i32, %arg1: i32) -> (i32, i32, i32) {
    %c0_i32 = arith.constant 0 : i32
    %c0_i32_0 = arith.constant 0 : i32
    return %arg0, %c0_i32, %arg1 : i32, i32, i32
  }
  func.func @transform_6(%arg0: i32, %arg1: i32) -> (i32, i32, i32) {
    %c0_i32 = arith.constant 0 : i32
    %c0_i32_0 = arith.constant 0 : i32
    return %arg0, %c0_i32, %arg1 : i32, i32, i32
  }
}

</mosaic_0001>

<llo_original>
// kernel: tpu_custom_call.1
$region0: #{tpu_custom_call.1}
  #allocation0 [shape = 'u32[]', space=smem, size = 0x4, offset = 0x4, fixed_abs, tag = 'smem constant byte address 0x4 - core index']
  #allocation1 [shape = 'u32[144,128]{1,0:T(1,128)}', space=vmem, size = 0x12000, scoped, tag = 'internal scratch']
  %s0 = inlined_call_operand.hbm [shape: f32[2,4,256], index: 0, kind: input, shape index: {}]
  %s1 = inlined_call_operand.hbm [shape: s32[2,1,256], index: 1, kind: input, shape index: {}]
  %s2 = inlined_call_operand.vmem [shape: f32[2,1,256], index: 2, kind: input, shape index: {}]
  %s3 = inlined_call_operand.hbm [shape: f32[2,1,256], index: 3, kind: output, shape index: {0}]
  %s4 = inlined_call_operand.hbm [shape: f32[2,1,256], index: 4, kind: output, shape index: {1}]
  %s5 = inlined_call_operand.hbm [shape: f32[2,1,256], index: 5, kind: output, shape index: {2}]
  %s6 = inlined_call_operand.hbm [shape: f32[2,1,256], index: 6, kind: output, shape index: {3}]
  %7 = xla_tuple %s3, %s4, %s5, %s6
  %s8 = sld [smem:[#allocation0]]
  $region77: #{tpu_custom_call.1} parent=0
    _
  %s10 = ssub.s32 1, %s8
  %s11 = scalar_select 0, %s10, %s8
  $region1: #{tpu_custom_call.1} parent=0
    #allocation2 [shape = 'u8[8192]{0}', space=vmem, size = 0x2000, scoped, tag = 'input window, operand 0']
    #allocation3 [shape = 's32[2]{0}', space=sflag, size = 0x8, scoped, tag = 'scoped memory for tpu_custom_call.1']
    #allocation4 [shape = 's32[2]{0}', space=sflag, size = 0x8, scoped, tag = 'scoped memory for tpu_custom_call.1']
    #allocation5 [shape = 'u8[2048]{0}', space=vmem, size = 0x800, scoped, tag = 'input window, operand 1']
    #allocation6 [shape = 's32[2]{0}', space=sflag, size = 0x8, scoped, tag = 'scoped memory for tpu_custom_call.1']
    #allocation7 [shape = 'u8[2048]{0}', space=vmem, size = 0x800, scoped, tag = 'output window, operand 0']
    #allocation8 [shape = 'u8[2048]{0}', space=vmem, size = 0x800, scoped, tag = 'output window, operand 1']
    #allocation9 [shape = 's32[2]{0}', space=sflag, size = 0x8, scoped, tag = 'scoped memory for tpu_custom_call.1']
    #allocation10 [shape = 'u8[2048]{0}', space=vmem, size = 0x800, scoped, tag = 'output window, operand 2']
    #allocation11 [shape = 'u8[2048]{0}', space=vmem, size = 0x800, scoped, tag = 'output window, operand 3']
    #allocation12 [shape = 's32[2]{0}', space=sflag, size = 0x8, scoped, tag = 'scoped memory for tpu_custom_call.1']
    %12 = vsyncpa [#allocation3], 0
    %s13 = scalar_lea.sflag [#allocation3], 1
    %14 = vsyncpa %s13, 0
    %15 = vsyncpa [#allocation6], 0
    %s16 = scalar_lea.sflag [#allocation6], 1
    %17 = vsyncpa %s16, 0
    %18 = vsyncpa [#allocation4], 0
    %s19 = scalar_lea.sflag [#allocation4], 1
    %20 = vsyncpa %s19, 0
    %21 = vsyncpa [#allocation9], 0
    %s22 = scalar_lea.sflag [#allocation9], 1
    %23 = vsyncpa %s22, 0
    %24 = vsyncpa [#allocation12], 0
    %s25 = scalar_lea.sflag [#allocation12], 1
    %26 = vsyncpa %s25, 0
    loop: start=0, step=1, limit=4
    $region2: #{tpu_custom_call.1} parent=1 // loop_pre_header
      _
    $region3: #{tpu_custom_call.1} parent=1 // loop_header
      %s28 = sphi 0, %s32
      %p29 = scmp.ge.s32.totalorder %s28, 4
      %s35 = sphi 0, %s47
      %s36 = sphi 0, %s43
      %s37 = sphi 0, %s35
      %s38 = sphi 0, %s36
      %s39 = sphi 0, %s37
      %s40 = sphi 0, %s38
      %s52 = sphi 0, %s54
      %s55 = sphi 0, %s52
      %s56 = sphi 0, %s55
      %s72 = sphi 0, %s56
      %s80 = sphi 0, %s82
      %s83 = sphi 0, %s80
      %s84 = sphi 0, %s83
      %s100 = sphi 0, %s84
      %s108 = sphi 0, %s110
      %s111 = sphi 0, %s108
      %s112 = sphi 0, %s111
      %s128 = sphi 0, %s112
      %s136 = sphi 0, %s138
      %s139 = sphi 0, %s136
      %s140 = sphi 0, %s139
      %s156 = sphi 0, %s140
      %s164 = sphi 0, %s166
      %s167 = sphi 0, %s164
      %s168 = sphi 0, %s167
      %s184 = sphi 0, %s168
      %s192 = sphi 0, %s194
      %s195 = sphi 0, %s192
      %s196 = sphi 0, %s195
      %s212 = sphi 0, %s196
      %s220 = sphi 0, %s222
      %s223 = sphi 0, %s220
      %s224 = sphi 0, %s223
      %s240 = sphi 0, %s224
    $region4: #{tpu_custom_call.1} parent=1 // loop_header_branch
      %31 = sbr.rel (%p29) target = $region8
    $region5: #{tpu_custom_call.1} parent=1 // loop_body
      %s33 = ssub.s32 %s28, 1
      %s34 = ssub.s32 %s28, 2
      %s41 = sadd.s32 1, %s36
      %p42 = scmp.ge.s32.totalorder %s41, 1
      %s43 = scalar_select %p42, 0, %s41
      %s44 = sadd.s32 1, %s35
      %s45 = scalar_select %p42, %s44, %s35
      %p46 = scmp.ge.s32.totalorder %s45, 2
      %s47 = scalar_select %p46, 0, %s45
      %s48 = ssub.s32 %s35, %s47
      %s49 = ssub.s32 %s36, %s43
      %s50 = sor.u32 %s48, %s49
      %p51 = scmp.eq.s32.totalorder %s50, 0
      %s53 = sadd.s32 %s52, 1
      %s54 = scalar_select %p51, %s52, %s53
      %p57 = pneg %p51
      %p58 = scmp.eq.s32.totalorder %s28, 1
      %p59 = por %p57, %p58
      %p60 = scmp.ne.s32.totalorder %s52, %s55
      %p61 = scmp.eq.s32.totalorder %s28, 0
      %p62 = por %p60, %p61
      %p63 = scmp.ne.s32.totalorder %s52, %s55
      %p64 = scmp.eq.s32.totalorder %s33, 1
      %p65 = por %p63, %p64
      %p66 = scmp.ne.s32.totalorder %s55, %s56
      %p67 = scmp.eq.s32.totalorder %s33, 0
      %p68 = por %p66, %p67
      %p69 = scmp.ne.s32.totalorder %s55, %s56
      %p70 = scmp.eq.s32.totalorder %s34, 1
      %p71 = por %p69, %p70
      %p73 = scmp.ne.s32.totalorder %s56, %s72
      %p74 = scmp.eq.s32.totalorder %s34, 0
      %p75 = por %p73, %p74
      %s76 = ssub.s32 %s35, %s47
      %s77 = ssub.s32 %s36, %s43
      %s78 = sor.u32 %s76, %s77
      %p79 = scmp.eq.s32.totalorder %s78, 0
      %s81 = sadd.s32 %s80, 1
      %s82 = scalar_select %p79, %s80, %s81
      %p85 = pneg %p79
      %p86 = scmp.eq.s32.totalorder %s28, 1
      %p87 = por %p85, %p86
      %p88 = scmp.ne.s32.totalorder %s80, %s83
      %p89 = scmp.eq.s32.totalorder %s28, 0
      %p90 = por %p88, %p89
      %p91 = scmp.ne.s32.totalorder %s80, %s83
      %p92 = scmp.eq.s32.totalorder %s33, 1
      %p93 = por %p91, %p92
      %p94 = scmp.ne.s32.totalorder %s83, %s84
      %p95 = scmp.eq.s32.totalorder %s33, 0
      %p96 = por %p94, %p95
      %p97 = scmp.ne.s32.totalorder %s83, %s84
      %p98 = scmp.eq.s32.totalorder %s34, 1
      %p99 = por %p97, %p98
      %p101 = scmp.ne.s32.totalorder %s84, %s100
      %p102 = scmp.eq.s32.totalorder %s34, 0
      %p103 = por %p101, %p102
      %s104 = ssub.s32 %s35, %s47
      %s105 = ssub.s32 %s36, %s43
      %s106 = sor.u32 %s104, %s105
      %p107 = scmp.eq.s32.totalorder %s106, 0
      %s109 = sadd.s32 %s108, 1
      %s110 = scalar_select %p107, %s108, %s109
      %p113 = pneg %p107
      %p114 = scmp.eq.s32.totalorder %s28, 1
      %p115 = por %p113, %p114
      %p116 = scmp.ne.s32.totalorder %s108, %s111
      %p117 = scmp.eq.s32.totalorder %s28, 0
      %p118 = por %p116, %p117
      %p119 = scmp.ne.s32.totalorder %s108, %s111
      %p120 = scmp.eq.s32.totalorder %s33, 1
      %p121 = por %p119, %p120
      %p122 = scmp.ne.s32.totalorder %s111, %s112
      %p123 = scmp.eq.s32.totalorder %s33, 0
      %p124 = por %p122, %p123
      %p125 = scmp.ne.s32.totalorder %s111, %s112
      %p126 = scmp.eq.s32.totalorder %s34, 1
      %p127 = por %p125, %p126
      %p129 = scmp.ne.s32.totalorder %s112, %s128
      %p130 = scmp.eq.s32.totalorder %s34, 0
      %p131 = por %p129, %p130
      %s132 = ssub.s32 %s35, %s47
      %s133 = ssub.s32 %s36, %s43
      %s134 = sor.u32 %s132, %s133
      %p135 = scmp.eq.s32.totalorder %s134, 0
      %s137 = sadd.s32 %s136, 1
      %s138 = scalar_select %p135, %s136, %s137
      %p141 = pneg %p135
      %p142 = scmp.eq.s32.totalorder %s28, 1
      %p143 = por %p141, %p142
      %p144 = scmp.ne.s32.totalorder %s136, %s139
      %p145 = scmp.eq.s32.totalorder %s28, 0
      %p146 = por %p144, %p145
      %p147 = scmp.ne.s32.totalorder %s136, %s139
      %p148 = scmp.eq.s32.totalorder %s33, 1
      %p149 = por %p147, %p148
      %p150 = scmp.ne.s32.totalorder %s139, %s140
      %p151 = scmp.eq.s32.totalorder %s33, 0
      %p152 = por %p150, %p151
      %p153 = scmp.ne.s32.totalorder %s139, %s140
      %p154 = scmp.eq.s32.totalorder %s34, 1
      %p155 = por %p153, %p154
      %p157 = scmp.ne.s32.totalorder %s140, %s156
      %p158 = scmp.eq.s32.totalorder %s34, 0
      %p159 = por %p157, %p158
      %s160 = ssub.s32 %s35, %s47
      %s161 = ssub.s32 %s36, %s43
      %s162 = sor.u32 %s160, %s161
      %p163 = scmp.eq.s32.totalorder %s162, 0
      %s165 = sadd.s32 %s164, 1
      %s166 = scalar_select %p163, %s164, %s165
      %p169 = pneg %p163
      %p170 = scmp.eq.s32.totalorder %s28, 1
      %p171 = por %p169, %p170
      %p172 = scmp.ne.s32.totalorder %s164, %s167
      %p173 = scmp.eq.s32.totalorder %s28, 0
      %p174 = por %p172, %p173
      %p175 = scmp.ne.s32.totalorder %s164, %s167
      %p176 = scmp.eq.s32.totalorder %s33, 1
      %p177 = por %p175, %p176
      %p178 = scmp.ne.s32.totalorder %s167, %s168
      %p179 = scmp.eq.s32.totalorder %s33, 0
      %p180 = por %p178, %p179
      %p181 = scmp.ne.s32.totalorder %s167, %s168
      %p182 = scmp.eq.s32.totalorder %s34, 1
      %p183 = por %p181, %p182
      %p185 = scmp.ne.s32.totalorder %s168, %s184
      %p186 = scmp.eq.s32.totalorder %s34, 0
      %p187 = por %p185, %p186
      %s188 = ssub.s32 %s35, %s47
      %s189 = ssub.s32 %s36, %s43
      %s190 = sor.u32 %s188, %s189
      %p191 = scmp.eq.s32.totalorder %s190, 0
      %s193 = sadd.s32 %s192, 1
      %s194 = scalar_select %p191, %s192, %s193
      %p197 = pneg %p191
      %p198 = scmp.eq.s32.totalorder %s28, 1
      %p199 = por %p197, %p198
      %p200 = scmp.ne.s32.totalorder %s192, %s195
      %p201 = scmp.eq.s32.totalorder %s28, 0
      %p202 = por %p200, %p201
      %p203 = scmp.ne.s32.totalorder %s192, %s195
      %p204 = scmp.eq.s32.totalorder %s33, 1
      %p205 = por %p203, %p204
      %p206 = scmp.ne.s32.totalorder %s195, %s196
      %p207 = scmp.eq.s32.totalorder %s33, 0
      %p208 = por %p206, %p207
      %p209 = scmp.ne.s32.totalorder %s195, %s196
      %p210 = scmp.eq.s32.totalorder %s34, 1
      %p211 = por %p209, %p210
      %p213 = scmp.ne.s32.totalorder %s196, %s212
      %p214 = scmp.eq.s32.totalorder %s34, 0
      %p215 = por %p213, %p214
      %s216 = ssub.s32 %s35, %s47
      %s217 = ssub.s32 %s36, %s43
      %s218 = sor.u32 %s216, %s217
      %p219 = scmp.eq.s32.totalorder %s218, 0
      %s221 = sadd.s32 %s220, 1
      %s222 = scalar_select %p219, %s220, %s221
      %p225 = pneg %p219
      %p226 = scmp.eq.s32.totalorder %s28, 1
      %p227 = por %p225, %p226
      %p228 = scmp.ne.s32.totalorder %s220, %s223
      %p229 = scmp.eq.s32.totalorder %s28, 0
      %p230 = por %p228, %p229
      %p231 = scmp.ne.s32.totalorder %s220, %s223
      %p232 = scmp.eq.s32.totalorder %s33, 1
      %p233 = por %p231, %p232
      %p234 = scmp.ne.s32.totalorder %s223, %s224
      %p235 = scmp.eq.s32.totalorder %s33, 0
      %p236 = por %p234, %p235
      %p237 = scmp.ne.s32.totalorder %s223, %s224
      %p238 = scmp.eq.s32.totalorder %s34, 1
      %p239 = por %p237, %p238
      %p241 = scmp.ne.s32.totalorder %s224, %s240
      %p242 = scmp.eq.s32.totalorder %s34, 0
      %p243 = por %p241, %p242
      %p244 = scmp.le.s32.totalorder 1, %s28
      %p245 = scmp.lt.s32.totalorder %s28, 3
      %p246 = pnand %p244, %p245
      %p247 = pneg %p246
      // Predicated region
      $region9: #{tpu_custom_call.1} parent=5 // pred_check
        _
      $region10: #{tpu_custom_call.1} parent=5 // pred_check_branch
        %249 = sbr.rel (%p246) target = $region12
      $region11: #{tpu_custom_call.1} parent=5 // pred_region
        %s250 = ssub.s32 %s28, 1
      $region12: #{tpu_custom_call.1} parent=5 // pred_fallthru
        _
      %p251 = scmp.lt.s32.totalorder %s28, 2
      // Predicated region
      $region13: #{tpu_custom_call.1} parent=5 // pred_check
        %p252 = pneg %p251
      $region14: #{tpu_custom_call.1} parent=5 // pred_check_branch
        %254 = sbr.rel (%p252) target = $region16
      $region15: #{tpu_custom_call.1} parent=5 // pred_region
        // Predicated region
        $region17: #{tpu_custom_call.1} parent=15 // pred_check
          %p255 = pneg %p62
        $region18: #{tpu_custom_call.1} parent=15 // pred_check_branch
          %257 = sbr.rel (%p255) target = $region20
        $region19: #{tpu_custom_call.1} parent=15 // pred_region
          %s258 = sand.u32 %s52, 1
          %s259 = scalar_lea.sflag [#allocation3], %s258
          %s260 = sand.u32 %s52, 1
          %s261 = smul.addr %s260, 8
          %s262 = scalar_lea.vmem [#allocation2], %s261
          %s263 = smul.u32 2, %s36
          %s265 = ssub.s32 128, 128
          %266 = vsyncadd %s259, %s265
          %s267 = smul.addr %s35, 2
          %s268 = sadd.s32 %s263, %s267
          %s269 = smul.addr %s268, 64
          %s270 = scalar_lea.hbm %s0, %s269
          %s272 = sshll.u32 %s262, 4
          %s273 = int_to_ptr.vmem [resolvable:$true] %s272
          %275 = dma.hbm_to_vmem [thread:$0]  %s270, 128, %s273, %s259
        $region20: #{tpu_custom_call.1} parent=15 // pred_fallthru
          _
        // Predicated region
        $region21: #{tpu_custom_call.1} parent=15 // pred_check
          %p276 = pneg %p90
        $region22: #{tpu_custom_call.1} parent=15 // pred_check_branch
          %278 = sbr.rel (%p276) target = $region24
        $region23: #{tpu_custom_call.1} parent=15 // pred_region
          %s279 = sand.u32 %s80, 1
          %s280 = scalar_lea.sflag [#allocation6], %s279
          %s281 = sand.u32 %s80, 1
          %s282 = smul.addr %s281, 2
          %s283 = scalar_lea.vmem [#allocation5], %s282
          %s284 = smul.u32 2, %s36
          %s286 = ssub.s32 32, 32
          %287 = vsyncadd %s280, %s286
          %s288 = smul.addr %s35, 2
          %s289 = sadd.s32 %s284, %s288
          %s290 = smul.addr %s289, 16
          %s291 = scalar_lea.hbm %s1, %s290
          %s293 = sshll.u32 %s283, 4
          %s294 = int_to_ptr.vmem [resolvable:$true] %s293
          %296 = dma.hbm_to_vmem [thread:$0]  %s291, 32, %s294, %s280
        $region24: #{tpu_custom_call.1} parent=15 // pred_fallthru
          _
        // Predicated region
        $region25: #{tpu_custom_call.1} parent=15 // pred_check
          %p297 = pneg %p118
        $region26: #{tpu_custom_call.1} parent=15 // pred_check_branch
          %299 = sbr.rel (%p297) target = $region28
        $region27: #{tpu_custom_call.1} parent=15 // pred_region
          %s300 = smul.u32 2, %s36
          %p301 = scmp.lt.s32.totalorder %s35, 1
          %s302 = scalar_select %p301, %s35, 1
          %p303 = scmp.lt.s32.totalorder %s300, 1
          %s304 = scalar_select %p303, %s300, 1
          %s305 = smul.addr %s302, 2
          %s306 = sadd.s32 %s304, %s305
          %s307 = scalar_lea.vmem %s2, %s306
          %s308 = smul.u32 2, %s36
        $region28: #{tpu_custom_call.1} parent=15 // pred_fallthru
          _
      $region16: #{tpu_custom_call.1} parent=5 // pred_fallthru
        _
      %p309 = scmp.le.s32.totalorder 1, %s28
      %p310 = scmp.lt.s32.totalorder %s28, 3
      %p311 = pnand %p309, %p310
      %p312 = pneg %p311
      // Predicated region
      $region29: #{tpu_custom_call.1} parent=5 // pred_check
        _
      $region30: #{tpu_custom_call.1} parent=5 // pred_check_branch
        %314 = sbr.rel (%p311) target = $region32
      $region31: #{tpu_custom_call.1} parent=5 // pred_region
        %s315 = ssub.s32 %s28, 1
        %s316 = sand.u32 %s55, 1
        %s317 = scalar_lea.sflag [#allocation3], %s316
        %s318 = sand.u32 %s55, 1
        %s319 = smul.addr %s318, 8
        %s320 = scalar_lea.vmem [#allocation2], %s319
        // Predicated region
        $region33: #{tpu_custom_call.1} parent=31 // pred_check
          %p321 = pneg %p68
        $region34: #{tpu_custom_call.1} parent=31 // pred_check_branch
          %323 = sbr.rel (%p321) target = $region36
        $region35: #{tpu_custom_call.1} parent=31 // pred_region
          %324 = dma.done %s317, 128
        $region36: #{tpu_custom_call.1} parent=31 // pred_fallthru
          _
        %s325 = sand.u32 %s83, 1
        %s326 = scalar_lea.sflag [#allocation6], %s325
        %s327 = sand.u32 %s83, 1
        %s328 = smul.addr %s327, 2
        %s329 = scalar_lea.vmem [#allocation5], %s328
        // Predicated region
        $region37: #{tpu_custom_call.1} parent=31 // pred_check
          %p330 = pneg %p96
        $region38: #{tpu_custom_call.1} parent=31 // pred_check_branch
          %332 = sbr.rel (%p330) target = $region40
        $region39: #{tpu_custom_call.1} parent=31 // pred_region
          %333 = dma.done %s326, 32
        $region40: #{tpu_custom_call.1} parent=31 // pred_fallthru
          _
        %s334 = sand.u32 %s55, 1
        %s335 = scalar_lea.sflag [#allocation3], %s334
        %s336 = sand.u32 %s55, 1
        %s337 = smul.addr %s336, 8
        %s338 = scalar_lea.vmem [#allocation2], %s337
        %p339 = pneg %p68
        %p340 = pneg %p65
        %s341 = sand.u32 %s83, 1
        %s342 = scalar_lea.sflag [#allocation6], %s341
        %s343 = sand.u32 %s83, 1
        %s344 = smul.addr %s343, 2
        %s345 = scalar_lea.vmem [#allocation5], %s344
        %p346 = pneg %p96
        %p347 = pneg %p93
        %s348 = smul.u32 2, %s38
        %p349 = scmp.lt.s32.totalorder %s37, 1
        %s350 = scalar_select %p349, %s37, 1
        %p351 = scmp.lt.s32.totalorder %s348, 1
        %s352 = scalar_select %p351, %s348, 1
        %s353 = smul.addr %s350, 2
        %s354 = sadd.s32 %s352, %s353
        %s355 = scalar_lea.vmem %s2, %s354
        %p356 = pneg %p124
        %p357 = pneg %p121
        %p358 = pneg %p152
        %p359 = pneg %p149
        %s360 = sand.u32 %s139, 1
        %s361 = scalar_lea.sflag [#allocation4], %s360
        %s362 = sand.u32 %s139, 1
        %s363 = smul.addr %s362, 2
        %s364 = scalar_lea.vmem [#allocation7], %s363
        %p365 = pneg %p180
        %p366 = pneg %p177
        %s367 = sand.u32 %s33, 1
        %s368 = scalar_lea.sflag [#allocation9], %s367
        %s369 = sand.u32 %s167, 1
        %s370 = smul.addr %s369, 2
        %s371 = scalar_lea.vmem [#allocation8], %s370
        %p372 = pneg %p208
        %p373 = pneg %p205
        %s374 = sand.u32 %s33, 1
        %s375 = scalar_lea.sflag [#allocation9], %s374
        %s376 = sand.u32 %s195, 1
        %s377 = smul.addr %s376, 2
        %s378 = scalar_lea.vmem [#allocation10], %s377
        %p379 = pneg %p236
        %p380 = pneg %p233
        %s381 = sand.u32 %s223, 1
        %s382 = scalar_lea.sflag [#allocation12], %s381
        %s383 = sand.u32 %s223, 1
        %s384 = smul.addr %s383, 2
        %s385 = scalar_lea.vmem [#allocation11], %s384
        %s386 = smul.u32 2, %s38
        %s387 = smul.u32 2, %s38
        %s388 = smul.u32 2, %s38
        %p389 = scmp.lt.s32.totalorder %s37, 1
        %s390 = scalar_select %p389, %s37, 1
        %p391 = scmp.lt.s32.totalorder %s388, 1
        %s392 = scalar_select %p391, %s388, 1
        %s393 = smul.addr %s390, 2
        %s394 = sadd.s32 %s392, %s393
        %s395 = scalar_lea.vmem %s2, %s394
        %s396 = smul.u32 2, %s38
        %s397 = smul.u32 2, %s38
        %s398 = smul.u32 2, %s38
        %s399 = smul.u32 2, %s38
        %s400 = smul.u32 2, %s38
        %v401 = vld [vmem:[%s320] sm:$0xff]
        %v402 = vld [vmem:[%s329] sm:$0x3]
        %v403 = vld [vmem:[%s395] sm:$0x3]
        %v405 = vcombine.high %v401, %v401
        %vm407 = vcmask 1043456
        %v408 = vsel %vm407, %v401, -inf
        %v409 = vrot.slane %v408, 4
        %v410 = vmax.f32 %v408, %v409
        %v411 = vrot.slane %v410, 2
        %v412 = vmax.f32 %v410, %v411
        %v413 = vrot.slane %v412, 1
        %v414 = vmax.f32 %v412, %v413
        %v415 = vsel %vm407, %v405, -inf
        %v416 = vrot.slane %v415, 4
        %v417 = vmax.f32 %v415, %v416
        %v418 = vrot.slane %v417, 2
        %v419 = vmax.f32 %v417, %v418
        %v420 = vrot.slane %v419, 1
        %v421 = vmax.f32 %v419, %v420
        %v424 = vcombine.low %v414, %v421
        %v426 = vsub.f32 %v401, %v424
        %v427 = vmul.f32 %v426, 1.442695
        %v428 = vpow.pop %v427
        %v430 = vcombine.high %v428, %v428
        %v432 = vsel %vm407, %v428, 0.0
        %v433 = vrot.slane %v432, 4
        %v434 = vadd.f32 %v432, %v433
        %v435 = vrot.slane %v434, 2
        %v436 = vadd.f32 %v434, %v435
        %v437 = vrot.slane %v436, 1
        %v438 = vadd.f32 %v436, %v437
        %v439 = vsel %vm407, %v430, 0.0
        %v440 = vrot.slane %v439, 4
        %v441 = vadd.f32 %v439, %v440
        %v442 = vrot.slane %v441, 2
        %v443 = vadd.f32 %v441, %v442
        %v444 = vrot.slane %v443, 1
        %v445 = vadd.f32 %v443, %v444
        %v446 = vlog2.pop %v438
        %v447 = vmul.f32 %v446, 0.6931472
        %v448 = vlog2.pop %v445
        %v449 = vmul.f32 %v448, 0.6931472
        %v450 = vadd.f32 %v447, %v414
        %v451 = vadd.f32 %v449, %v421
        %v452 = vrcp.pop %v438
        %v453 = vrcp.pop %v445
        %v454 = vlaneseq
        %v455 = vshrl.u32 %v454, 7
        %vm456 = vcmp.eq.f32.partialorder %v401, %v424
        %v458 = vunpack.c.l.s4 839922192
        %v459 = vunpack.c.0.s8 %v458
        %v460 = vlaneseq
        %v461 = vshrl.u32 %v460, 7
        %v462 = vsub.s32 %v459, %v461
        %v463 = vrot.slane %v455, %v462
        %v464 = vsel %vm456, %v463, 4
        %v465 = vcombine.high %v464, %v464
        %v466 = vsel %vm407, %v464, 2147483647
        %v467 = vrot.slane %v466, 4
        %vm468 = vcmp.lt.s32.totalorder %v466, %v467
        %v469 = vsel %vm468, %v466, %v467
        %v470 = vrot.slane %v469, 2
        %vm471 = vcmp.lt.s32.totalorder %v469, %v470
        %v472 = vsel %vm471, %v469, %v470
        %v473 = vrot.slane %v472, 1
        %vm474 = vcmp.lt.s32.totalorder %v472, %v473
        %v475 = vsel %vm474, %v472, %v473
        %v476 = vsel %vm407, %v465, 2147483647
        %v477 = vrot.slane %v476, 4
        %vm478 = vcmp.lt.s32.totalorder %v476, %v477
        %v479 = vsel %vm478, %v476, %v477
        %v480 = vrot.slane %v479, 2
        %vm481 = vcmp.lt.s32.totalorder %v479, %v480
        %v482 = vsel %vm481, %v479, %v480
        %v483 = vrot.slane %v482, 1
        %vm484 = vcmp.lt.s32.totalorder %v482, %v483
        %v485 = vsel %vm484, %v482, %v483
        %v486 = vlaneseq
        %v487 = vshrl.u32 %v486, 7
        %v488 = vsub.s32 0, %v487
        %v489 = vrot.slane %v402, %v488
        %v490 = vlaneseq
        %v491 = vshrl.u32 %v490, 7
        %v492 = vsub.s32 1, %v491
        %v493 = vrot.slane %v402, %v492
        %vm494 = vcmp.eq.s32.totalorder %v475, %v489
        %vm495 = vcmp.eq.s32.totalorder %v485, %v493
        %v496 = vsel %vm494, 1, 0
        %v497 = vsel %vm495, 1, 0
        %v498 = vcvt.s32.f32 %v496
        %v499 = vcvt.s32.f32 %v497
        %vm500 = vcmp.eq.s32.totalorder %v455, %v489
        %vm501 = vcmp.eq.s32.totalorder %v455, %v493
        %v502 = vsel %vm500, 1, 0
        %v503 = vsel %vm501, 1, 0
        %v504 = vcvt.s32.f32 %v502
        %v505 = vcvt.s32.f32 %v503
        %v508 = vcombine.low %v504, %v505
        %v510 = vmul.f32 %v401, %v508
        %v512 = vcombine.high %v510, %v510
        %v514 = vsel %vm407, %v510, 0.0
        %v515 = vrot.slane %v514, 4
        %v516 = vadd.f32 %v514, %v515
        %v517 = vrot.slane %v516, 2
        %v518 = vadd.f32 %v516, %v517
        %v519 = vrot.slane %v518, 1
        %v520 = vadd.f32 %v518, %v519
        %v521 = vsel %vm407, %v512, 0.0
        %v522 = vrot.slane %v521, 4
        %v523 = vadd.f32 %v521, %v522
        %v524 = vrot.slane %v523, 2
        %v525 = vadd.f32 %v523, %v524
        %v526 = vrot.slane %v525, 1
        %v527 = vadd.f32 %v525, %v526
        %v528 = vmul.f32 %v452, 2.5
        %v529 = vmul.f32 %v453, 2.5
        %v530 = vmul.f32 %v528, 1.442695
        %v531 = vpow.pop %v530
        %v532 = vmul.f32 %v529, 1.442695
        %v533 = vpow.pop %v532
        %v534 = vsub.f32 %v498, %v452
        %v535 = vsub.f32 %v499, %v453
        %v537 = vlaneseq
        %v538 = vshrl.u32 %v537, 7
        %v539 = vsub.s32 0, %v538
        %v540 = vrot.slane %v403, %v539
        %v541 = vlaneseq
        %v542 = vshrl.u32 %v541, 7
        %v543 = vsub.s32 1, %v542
        %v544 = vrot.slane %v403, %v543
        %v547 = vmul.f32 %v534, %v540
        %v548 = vmul.f32 %v535, %v544
        %v551 = vcombine.low %v547, %v548
        %v553 = vunpack.c.l.s4 1966171168
        %v554 = vunpack.c.0.s8 %v553
        %v555 = vlaneseq
        %v556 = vshrl.u32 %v555, 7
        %v557 = vsub.s32 %v554, %v556
        %v558 = vrot.slane %v551, %v557
        %v560 = vunpack.c.l.s4 1966171168
        %v561 = vunpack.c.0.s8 %v560
        %v562 = vlaneseq
        %v563 = vshrl.u32 %v562, 7
        %v564 = vsub.s32 %v561, %v563
        %v565 = vrot.slane %v558, %v564
        %v567 = vlaneseq
        %vm568 = vcmp.ge.s32.totalorder %v567, 0
        %vm569 = vcmp.lt.s32.totalorder %v567, 256
        %vm570 = vmand %vm568, %vm569
        %571 = vst.msk [vmem:[%s364] sm:$0x3] %vm570, %v565
        %v574 = vcombine.low %v531, %v533
        %v576 = vunpack.c.l.s4 1966171168
        %v577 = vunpack.c.0.s8 %v576
        %v578 = vlaneseq
        %v579 = vshrl.u32 %v578, 7
        %v580 = vsub.s32 %v577, %v579
        %v581 = vrot.slane %v574, %v580
        %v583 = vunpack.c.l.s4 1966171168
        %v584 = vunpack.c.0.s8 %v583
        %v585 = vlaneseq
        %v586 = vshrl.u32 %v585, 7
        %v587 = vsub.s32 %v584, %v586
        %v588 = vrot.slane %v581, %v587
        %590 = vst.msk [vmem:[%s371] sm:$0x3] %vm570, %v588
        %v591 = vrcp.pop %v531
        %v592 = vrcp.pop %v533
        %v595 = vcombine.low %v591, %v592
        %v597 = vunpack.c.l.s4 1966171168
        %v598 = vunpack.c.0.s8 %v597
        %v599 = vlaneseq
        %v600 = vshrl.u32 %v599, 7
        %v601 = vsub.s32 %v598, %v600
        %v602 = vrot.slane %v595, %v601
        %v604 = vunpack.c.l.s4 1966171168
        %v605 = vunpack.c.0.s8 %v604
        %v606 = vlaneseq
        %v607 = vshrl.u32 %v606, 7
        %v608 = vsub.s32 %v605, %v607
        %v609 = vrot.slane %v602, %v608
        %611 = vst.msk [vmem:[%s378] sm:$0x3] %vm570, %v609
        %v612 = vsub.f32 %v450, %v520
        %v613 = vsub.f32 %v451, %v527
        %v614 = vmul.f32 %v612, %v540
        %v615 = vmul.f32 %v613, %v544
        %v618 = vcombine.low %v614, %v615
        %v620 = vunpack.c.l.s4 1966171168
        %v621 = vunpack.c.0.s8 %v620
        %v622 = vlaneseq
        %v623 = vshrl.u32 %v622, 7
        %v624 = vsub.s32 %v621, %v623
        %v625 = vrot.slane %v618, %v624
        %v627 = vunpack.c.l.s4 1966171168
        %v628 = vunpack.c.0.s8 %v627
        %v629 = vlaneseq
        %v630 = vshrl.u32 %v629, 7
        %v631 = vsub.s32 %v628, %v630
        %v632 = vrot.slane %v625, %v631
        %634 = vst.msk [vmem:[%s385] sm:$0x3] %vm570, %v632
        %s635 = sand.u32 %s139, 1
        %s636 = scalar_lea.sflag [#allocation4], %s635
        %s637 = sand.u32 %s139, 1
        %s638 = smul.addr %s637, 2
        %s639 = scalar_lea.vmem [#allocation7], %s638
        %s640 = sand.u32 %s33, 1
        %s641 = scalar_lea.sflag [#allocation9], %s640
        %s642 = sand.u32 %s167, 1
        %s643 = smul.addr %s642, 2
        %s644 = scalar_lea.vmem [#allocation8], %s643
        %s645 = sand.u32 %s33, 1
        %s646 = scalar_lea.sflag [#allocation9], %s645
        %s647 = sand.u32 %s195, 1
        %s648 = smul.addr %s647, 2
        %s649 = scalar_lea.vmem [#allocation10], %s648
        %s650 = sand.u32 %s223, 1
        %s651 = scalar_lea.sflag [#allocation12], %s650
        %s652 = sand.u32 %s223, 1
        %s653 = smul.addr %s652, 2
        %s654 = scalar_lea.vmem [#allocation11], %s653
        // Predicated region
        $region41: #{tpu_custom_call.1} parent=31 // pred_check
          %p655 = pneg %p149
        $region42: #{tpu_custom_call.1} parent=31 // pred_check_branch
          %657 = sbr.rel (%p655) target = $region44
        $region43: #{tpu_custom_call.1} parent=31 // pred_region
          %s658 = smul.u32 2, %s38
          %s660 = ssub.s32 32, 32
          %661 = vsyncadd %s636, %s660
          %s662 = smul.addr %s37, 2
          %s663 = sadd.s32 %s658, %s662
          %s664 = smul.addr %s663, 16
          %s665 = scalar_lea.hbm %s3, %s664
          %s667 = sshll.u32 %s639, 4
          %s668 = int_to_ptr.vmem [resolvable:$true] %s667
          %670 = dma.vmem_to_hbm [thread:$0]  %s668, 32, %s665, %s636
        $region44: #{tpu_custom_call.1} parent=31 // pred_fallthru
          _
        // Predicated region
        $region45: #{tpu_custom_call.1} parent=31 // pred_check
          %p671 = pneg %p177
        $region46: #{tpu_custom_call.1} parent=31 // pred_check_branch
          %673 = sbr.rel (%p671) target = $region48
        $region47: #{tpu_custom_call.1} parent=31 // pred_region
          %s674 = smul.u32 2, %s38
          %s676 = ssub.s32 32, 32
          %677 = vsyncadd %s641, %s676
          %s678 = smul.addr %s37, 2
          %s679 = sadd.s32 %s674, %s678
          %s680 = smul.addr %s679, 16
          %s681 = scalar_lea.hbm %s4, %s680
          %s683 = sshll.u32 %s644, 4
          %s684 = int_to_ptr.vmem [resolvable:$true] %s683
          %686 = dma.vmem_to_hbm [thread:$0]  %s684, 32, %s681, %s641
        $region48: #{tpu_custom_call.1} parent=31 // pred_fallthru
          _
        // Predicated region
        $region49: #{tpu_custom_call.1} parent=31 // pred_check
          %p687 = pneg %p205
        $region50: #{tpu_custom_call.1} parent=31 // pred_check_branch
          %689 = sbr.rel (%p687) target = $region52
        $region51: #{tpu_custom_call.1} parent=31 // pred_region
          %s690 = smul.u32 2, %s38
          %s692 = ssub.s32 32, 32
          %693 = vsyncadd %s646, %s692
          %s694 = smul.addr %s37, 2
          %s695 = sadd.s32 %s690, %s694
          %s696 = smul.addr %s695, 16
          %s697 = scalar_lea.hbm %s5, %s696
          %s699 = sshll.u32 %s649, 4
          %s700 = int_to_ptr.vmem [resolvable:$true] %s699
          %702 = dma.vmem_to_hbm [thread:$0]  %s700, 32, %s697, %s646
        $region52: #{tpu_custom_call.1} parent=31 // pred_fallthru
          _
        // Predicated region
        $region53: #{tpu_custom_call.1} parent=31 // pred_check
          %p703 = pneg %p233
        $region54: #{tpu_custom_call.1} parent=31 // pred_check_branch
          %705 = sbr.rel (%p703) target = $region56
        $region55: #{tpu_custom_call.1} parent=31 // pred_region
          %s706 = smul.u32 2, %s38
          %s708 = ssub.s32 32, 32
          %709 = vsyncadd %s651, %s708
          %s710 = smul.addr %s37, 2
          %s711 = sadd.s32 %s706, %s710
          %s712 = smul.addr %s711, 16
          %s713 = scalar_lea.hbm %s6, %s712
          %s715 = sshll.u32 %s654, 4
          %s716 = int_to_ptr.vmem [resolvable:$true] %s715
          %718 = dma.vmem_to_hbm [thread:$0]  %s716, 32, %s713, %s651
        $region56: #{tpu_custom_call.1} parent=31 // pred_fallthru
          _
      $region32: #{tpu_custom_call.1} parent=5 // pred_fallthru
        _
      %p719 = scmp.le.s32.totalorder 2, %s28
      // Predicated region
      $region57: #{tpu_custom_call.1} parent=5 // pred_check
        %p720 = pneg %p719
      $region58: #{tpu_custom_call.1} parent=5 // pred_check_branch
        %722 = sbr.rel (%p720) target = $region60
      $region59: #{tpu_custom_call.1} parent=5 // pred_region
        %s723 = ssub.s32 %s28, 2
        // Predicated region
        $region61: #{tpu_custom_call.1} parent=59 // pred_check
          %p724 = pneg %p155
        $region62: #{tpu_custom_call.1} parent=59 // pred_check_branch
          %726 = sbr.rel (%p724) target = $region64
        $region63: #{tpu_custom_call.1} parent=59 // pred_region
          %s727 = sand.u32 %s140, 1
          %s728 = scalar_lea.sflag [#allocation4], %s727
          %s729 = sand.u32 %s140, 1
          %s730 = smul.addr %s729, 2
          %s731 = scalar_lea.vmem [#allocation7], %s730
          %732 = dma.done %s728, 32
        $region64: #{tpu_custom_call.1} parent=59 // pred_fallthru
          _
        // Predicated region
        $region65: #{tpu_custom_call.1} parent=59 // pred_check
          %p733 = pneg %p183
        $region66: #{tpu_custom_call.1} parent=59 // pred_check_branch
          %735 = sbr.rel (%p733) target = $region68
        $region67: #{tpu_custom_call.1} parent=59 // pred_region
          %s736 = sand.u32 %s34, 1
          %s737 = scalar_lea.sflag [#allocation9], %s736
          %s738 = sand.u32 %s168, 1
          %s739 = smul.addr %s738, 2
          %s740 = scalar_lea.vmem [#allocation8], %s739
          %741 = dma.done %s737, 32
        $region68: #{tpu_custom_call.1} parent=59 // pred_fallthru
          _
        // Predicated region
        $region69: #{tpu_custom_call.1} parent=59 // pred_check
          %p742 = pneg %p211
        $region70: #{tpu_custom_call.1} parent=59 // pred_check_branch
          %744 = sbr.rel (%p742) target = $region72
        $region71: #{tpu_custom_call.1} parent=59 // pred_region
          %s745 = sand.u32 %s34, 1
          %s746 = scalar_lea.sflag [#allocation9], %s745
          %s747 = sand.u32 %s196, 1
          %s748 = smul.addr %s747, 2
          %s749 = scalar_lea.vmem [#allocation10], %s748
          %750 = dma.done %s746, 32
        $region72: #{tpu_custom_call.1} parent=59 // pred_fallthru
          _
        // Predicated region
        $region73: #{tpu_custom_call.1} parent=59 // pred_check
          %p751 = pneg %p239
        $region74: #{tpu_custom_call.1} parent=59 // pred_check_branch
          %753 = sbr.rel (%p751) target = $region76
        $region75: #{tpu_custom_call.1} parent=59 // pred_region
          %s754 = sand.u32 %s224, 1
          %s755 = scalar_lea.sflag [#allocation12], %s754
          %s756 = sand.u32 %s224, 1
          %s757 = smul.addr %s756, 2
          %s758 = scalar_lea.vmem [#allocation11], %s757
          %759 = dma.done %s755, 32
        $region76: #{tpu_custom_call.1} parent=59 // pred_fallthru
          _
      $region60: #{tpu_custom_call.1} parent=5 // pred_fallthru
        _
    $region6: #{tpu_custom_call.1} parent=1 // loop_footer
      %s32 = sadd.s32 1, %s28
    $region7: #{tpu_custom_call.1} parent=1 // loop_footer_branch
      %27 = sbr.rel target = $region3
    $region8: #{tpu_custom_call.1} parent=1 // loop_exit
      _
    %760 = vsyncpa [#allocation3], 1
    %s761 = scalar_lea.sflag [#allocation3], 1
    %762 = vsyncpa %s761, 1
    %763 = vsyncpa [#allocation6], 1
    %s764 = scalar_lea.sflag [#allocation6], 1
    %765 = vsyncpa %s764, 1
    %766 = vsyncpa [#allocation4], 1
    %s767 = scalar_lea.sflag [#allocation4], 1
    %768 = vsyncpa %s767, 1
    %769 = vsyncpa [#allocation9], 1
    %s770 = scalar_lea.sflag [#allocation9], 1
    %771 = vsyncpa %s770, 1
    %772 = vsyncpa [#allocation12], 1
    %s773 = scalar_lea.sflag [#allocation12], 1
    %774 = vsyncpa %s773, 1

</llo_original>
